<compile_context>
chip_gen: v6e
topology: v6e:2x2x1
jax: 0.10.0
libtpu: 0.0.40
codegen_flags: <defaults>
</compile_context>

<pallas_src>
import functools

import numpy as np
import jax
import jax.numpy as jnp
from jax.experimental import pallas as pl
from jax.experimental.pallas import tpu as pltpu

LANE = 128     # TPU lane width
SUBLANE = 8    # f32 sublane packing; batch tiles are multiples of this


def _round_up(n: int, m: int) -> int:
    return ((n + m - 1) // m) * m


def _fused_linear_kernel(x_ref, w_ref, b_ref, o_ref):
    """One (tb, in_dim) batch tile through the folded layer: o = x @ W + b.

    W is the pre-folded (in_dim, out_dim) weight (VMEM-resident across grid
    steps), b is (1, out_dim) f32. The dot accumulates in f32 on the MXU.
    """
    x = x_ref[...]
    if x.dtype != w_ref.dtype:        # trace-time check; in-VMEM cast, no HBM pass
        x = x.astype(w_ref.dtype)
    acc = jnp.dot(x, w_ref[...], preferred_element_type=jnp.float32)
    o_ref[...] = (acc + b_ref[...]).astype(o_ref.dtype)


def prepare_params(params, compute_dtype=jnp.float32):
    """ONE-TIME algebraic fold of the 4 nn.Linear layers into a single (W, b).

    There are no activations, so  x@W1^T+b1 -> ... -> @W4^T+b4  collapses exactly
    to  x @ W + b  with
        W = W1^T @ W2^T @ W3^T @ W4^T            (stored (input_dim, output_dim))
        b = ((b1 @ W2^T + b2) @ W3^T + b3) @ W4^T + b4
    The fold runs in float64 so the folded parameters are essentially exact.

    params: {"w{i}": (out, in) PyTorch-layout weights, "b{i}": (out,) biases}.
    Returns (W, b) with W in compute_dtype and b as (1, output_dim) f32.
    """
    W, b = None, None
    for i in (1, 2, 3, 4):
        wi = np.asarray(params[f"w{i}"], dtype=np.float64).T   # (in, out)
        bi = np.asarray(params[f"b{i}"], dtype=np.float64)     # (out,)
        if W is None:
            W, b = wi, bi
        else:
            W = W @ wi
            b = b @ wi + bi
    return (jnp.asarray(W, compute_dtype), jnp.asarray(b[None, :], jnp.float32))


@functools.partial(jax.jit, static_argnames=("batch_tile",))
def linear_regression_forward(x, w_fold, b_fold, batch_tile=512):
    """x: (batch, input_dim) -> (batch, output_dim). w_fold/b_fold from prepare_params."""
    batch, in_dim = x.shape
    out_dim = w_fold.shape[1]

    # Batch tile: multiple of 8 sublanes; split into >=2 grid steps when the
    # batch allows so v7x's two TensorCores both get work on the parallel axis.
    tb = min(batch_tile, _round_up(batch, SUBLANE))
    if -(-batch // tb) < 2 and batch >= 2 * SUBLANE:
        tb = _round_up(-(-batch // 2), SUBLANE)
    grid = (-(-batch // tb),)   # ragged last tile is fine: rows are independent

    itemsize = jnp.dtype(x.dtype).itemsize
    cost = pl.CostEstimate(
        flops=2 * batch * in_dim * out_dim + batch * out_dim,
        transcendentals=0,
        bytes_accessed=(batch * in_dim + in_dim * out_dim + out_dim
                        + batch * out_dim) * itemsize,
    )

    return pl.pallas_call(
        _fused_linear_kernel,
        out_shape=jax.ShapeDtypeStruct((batch, out_dim), x.dtype),
        grid=grid,
        in_specs=[
            pl.BlockSpec((tb, in_dim), lambda i: (i, 0)),     # x tile: streamed, no padding copy
            pl.BlockSpec(w_fold.shape, lambda i: (0, 0)),     # folded W: VMEM-resident
            pl.BlockSpec(b_fold.shape, lambda i: (0, 0)),     # folded b: VMEM-resident
        ],
        out_specs=pl.BlockSpec((tb, out_dim), lambda i: (i, 0)),
        compiler_params=pltpu.CompilerParams(
            dimension_semantics=("parallel",),     # lets v7x shard the batch over 2 TCs
            vmem_limit_bytes=32 * 1024 * 1024,     # explicit: > v5e's 16 MiB default, fits v7x
        ),
        cost_estimate=cost,
    )(x, w_fold, b_fold)


def init_params(key, input_dim, hidden_dim, output_dim):
    """Deterministic init mimicking nn.Linear (uniform +/- 1/sqrt(fan_in)), PyTorch layout."""
    dims = [(input_dim, hidden_dim), (hidden_dim, hidden_dim),
            (hidden_dim, hidden_dim), (hidden_dim, output_dim)]
    params = {}
    for i, (fan_in, fan_out) in enumerate(dims, start=1):
        key, kw, kb = jax.random.split(key, 3)
        bound = 1.0 / jnp.sqrt(fan_in)
        params[f"w{i}"] = jax.random.uniform(
            kw, (fan_out, fan_in), jnp.float32, -bound, bound)   # (out, in)
        params[f"b{i}"] = jax.random.uniform(
            kb, (fan_out,), jnp.float32, -bound, bound)
    return params


def reference_forward(x, params):
    h = x
    for i in (1, 2, 3, 4):
        h = h @ params[f"w{i}"].T + params[f"b{i}"]
    return h


if __name__ == "__main__":
    key = jax.random.PRNGKey(0)
    batch, input_dim, hidden_dim, output_dim = 8, 16, 32, 4

    key, kx, kx_big = jax.random.split(key, 3)
    x = jax.random.normal(kx, (batch, input_dim), jnp.float32)
    params = init_params(key, input_dim, hidden_dim, output_dim)

    # One-time fold (4 Linear layers -> 1 GEMM) + layout prep, outside the hot path.
    w_fold, b_fold = prepare_params(params, compute_dtype=jnp.float32)

    # Tiny-shape check (matches the original module's scale).
    out = linear_regression_forward(x, w_fold, b_fold)
    jax.block_until_ready(out)
    ref = reference_forward(x, params)
    assert out.shape == (batch, output_dim)
    assert jnp.allclose(out, ref, atol=1e-5, rtol=1e-4), \
        float(jnp.max(jnp.abs(out - ref)))

    # Larger batch exercises the 2-step "parallel" batch grid (both v7x TCs get work).
    x_big = jax.random.normal(kx_big, (512, input_dim), jnp.float32)
    out_big = linear_regression_forward(x_big, w_fold, b_fold)
    jax.block_until_ready(out_big)
    ref_big = reference_forward(x_big, params)
    assert out_big.shape == (512, output_dim)
    assert jnp.allclose(out_big, ref_big, atol=1e-5, rtol=1e-4)

    print("KERNEL_OK")
</pallas_src>

<mosaic_0001>
module attributes {stable_mosaic.version = 11 : i64} {
  func.func @_fused_linear_kernel(%arg0: i32, %arg1: memref<8x16xf32, #tpu.memory_space<vmem>>, %arg2: memref<16x4xf32, #tpu.memory_space<vmem>>, %arg3: memref<1x4xf32, #tpu.memory_space<vmem>>, %arg4: memref<8x4xf32, #tpu.memory_space<vmem>>) attributes {dimension_semantics = [#tpu.dimension_semantics<parallel>], iteration_bounds = array<i64: 1>, scalar_prefetch = 0 : i64, scratch_operands = 0 : i64, tpu.core_type = #tpu.core_type<tc>, window_params = [{transform_indices = @transform_0, window_bounds = array<i64: 8, 16>}, {pipeline_mode = #tpu.pipeline_mode<synchronous>, transform_indices = @transform_1, window_bounds = array<i64: 16, 4>}, {pipeline_mode = #tpu.pipeline_mode<synchronous>, transform_indices = @transform_2, window_bounds = array<i64: 1, 4>}, {transform_indices = @transform_3, window_bounds = array<i64: 8, 4>}]} {
    %c0 = arith.constant 0 : index
    %c0_0 = arith.constant 0 : index
    %0 = vector.load %arg1[%c0, %c0_0] : memref<8x16xf32, #tpu.memory_space<vmem>>, vector<8x16xf32>
    %c0_1 = arith.constant 0 : index
    %c0_2 = arith.constant 0 : index
    %1 = vector.load %arg2[%c0_1, %c0_2] : memref<16x4xf32, #tpu.memory_space<vmem>>, vector<16x4xf32>
    %cst = arith.constant dense<0.000000e+00> : vector<8x4xf32>
    %2 = tpu.matmul %0, %1, %cst {dimension_numbers = #tpu.dot_dimension_numbers<[1], [0], [0], [1], [0, 0, 1, 1], [], []>} : vector<8x16xf32>, vector<16x4xf32>, vector<8x4xf32> -> vector<8x4xf32>
    %c0_3 = arith.constant 0 : index
    %c0_4 = arith.constant 0 : index
    %3 = vector.load %arg3[%c0_3, %c0_4] : memref<1x4xf32, #tpu.memory_space<vmem>>, vector<1x4xf32>
    %4 = vector.broadcast %3 : vector<1x4xf32> to vector<8x4xf32>
    %5 = arith.addf %2, %4 : vector<8x4xf32>
    %c0_5 = arith.constant 0 : index
    %c0_6 = arith.constant 0 : index
    %6 = vector.load %arg4[%c0_5, %c0_6] : memref<8x4xf32, #tpu.memory_space<vmem>>, vector<8x4xf32>
    tpu.vector_store %arg4[%c0_5, %c0_6], %5 {strides = array<i32>} : memref<8x4xf32, #tpu.memory_space<vmem>>, vector<8x4xf32>,
    return
  }
  func.func @transform_0(%arg0: i32) -> (i32, i32) {
    %c0_i32 = arith.constant 0 : i32
    %c0_i32_0 = arith.constant 0 : i32
    return %arg0, %c0_i32 : i32, i32
  }
  func.func @transform_1(%arg0: i32) -> (i32, i32) {
    %c0_i32 = arith.constant 0 : i32
    %c0_i32_0 = arith.constant 0 : i32
    %c0_i32_1 = arith.constant 0 : i32
    return %c0_i32, %c0_i32_0 : i32, i32
  }
  func.func @transform_2(%arg0: i32) -> (i32, i32) {
    %c0_i32 = arith.constant 0 : i32
    %c0_i32_0 = arith.constant 0 : i32
    %c0_i32_1 = arith.constant 0 : i32
    return %c0_i32, %c0_i32_0 : i32, i32
  }
  func.func @transform_3(%arg0: i32) -> (i32, i32) {
    %c0_i32 = arith.constant 0 : i32
    %c0_i32_0 = arith.constant 0 : i32
    return %arg0, %c0_i32 : i32, i32
  }
}

</mosaic_0001>

<llo_original>
// kernel: linear_regression_forward.1
$region0: #{linear_regression_forward.1}
  #allocation0 [shape = 'u32[]', space=smem, size = 0x4, offset = 0x4, fixed_abs, tag = 'smem constant byte address 0x4 - core index']
  #allocation1 [shape = 'u32[144,128]{1,0:T(1,128)}', space=vmem, size = 0x12000, scoped, tag = 'internal scratch']
  %s0 = inlined_call_operand.vmem [shape: f32[8,16], index: 0, kind: input, shape index: {}]
  %s1 = inlined_call_operand.vmem [shape: f32[16,4], index: 1, kind: input, shape index: {}]
  %s2 = inlined_call_operand.vmem [shape: f32[1,4], index: 2, kind: input, shape index: {}]
  %s3 = inlined_call_operand.vmem [shape: f32[8,4], index: 3, kind: output, shape index: {}]
  %s4 = sld [smem:[#allocation0]]
  $region22: #{linear_regression_forward.1} parent=0
    _
  %s6 = ssub.s32 1, %s4
  %s7 = scalar_select 0, %s6, %s4
  // Predicated region
  $region2: #{linear_regression_forward.1} parent=0 // pred_check
    _
  $region3: #{linear_regression_forward.1} parent=0 // pred_check_branch
    %9 = sbr.rel (0) target = $region5
  $region4: #{linear_regression_forward.1} parent=0 // pred_region
    _
  $region5: #{linear_regression_forward.1} parent=0 // pred_fallthru
    _
  // Predicated region
  $region6: #{linear_regression_forward.1} parent=0 // pred_check
    _
  $region7: #{linear_regression_forward.1} parent=0 // pred_check_branch
    %11 = sbr.rel (0) target = $region9
  $region8: #{linear_regression_forward.1} parent=0 // pred_region
    _
  $region9: #{linear_regression_forward.1} parent=0 // pred_fallthru
    _
  // Predicated region
  $region10: #{linear_regression_forward.1} parent=0 // pred_check
    _
  $region11: #{linear_regression_forward.1} parent=0 // pred_check_branch
    %13 = sbr.rel (0) target = $region13
  $region12: #{linear_regression_forward.1} parent=0 // pred_region
    _
  $region13: #{linear_regression_forward.1} parent=0 // pred_fallthru
    _
  %v14 = vld [vmem:[%s0] sm:$0xff]
  %v15 = vld [vmem:[%s1] sm:$0xff]
  %v16 = vld [vmem:[%s1 + $0x8] sm:$0xff]
  %v17 = vld [vmem:[%s2] sm:$0x1]
  %v19 = vlaneseq
  %v20 = vshrl.u32 %v19, 7
  %v21 = vsub.s32 0, %v20
  %v22 = vrot.slane %v17, %v21
  %vm24 = vcmask 130048
  %v26 = vsel %vm24, %v14, 0
  %28 = vmatprep.subr.mxu0 0.0
  %29 = vmatpush1.msra.mxu0 0.0
  %30 = vmatprep.subr.mxu0 0.0
  %31 = vmatpush1.msra.mxu0 0.0
  %32 = vmatprep.subr.mxu0 0.0
  %33 = vmatpush1.msra.mxu0 0.0
  %34 = vmatprep.subr.mxu0 0.0
  %35 = vmatpush1.msra.mxu0 0.0
  %36 = vmatprep.subr.mxu0 0.0
  %37 = vmatpush1.msra.mxu0 0.0
  %38 = vmatprep.subr.mxu0 0.0
  %39 = vmatpush1.msra.mxu0 0.0
  %40 = vmatprep.subr.mxu0 0.0
  %41 = vmatpush1.msra.mxu0 0.0
  %42 = vmatprep.subr.mxu0 0.0
  %43 = vmatpush1.msra.mxu0 0.0
  %44 = vmatprep.subr.mxu0 0.0
  %45 = vmatpush1.msra.mxu0 0.0
  %46 = vmatprep.subr.mxu0 0.0
  %47 = vmatpush1.msra.mxu0 0.0
  %48 = vmatprep.subr.mxu0 0.0
  %49 = vmatpush1.msra.mxu0 0.0
  %50 = vmatprep.subr.mxu0 0.0
  %51 = vmatpush1.msra.mxu0 0.0
  %52 = vmatprep.subr.mxu0 0.0
  %53 = vmatpush1.msra.mxu0 0.0
  %54 = vmatprep.subr.mxu0 0.0
  %55 = vmatpush1.msra.mxu0 0.0
  %56 = vmatprep.subr.mxu0 0.0
  %57 = vmatpush1.msra.mxu0 %v16
  %58 = vmatprep.subr.mxu0 0.0
  %59 = vmatpush1.msra.mxu0 %v15
  %60 = vmatprep.subr.mxu0 0.0
  %61 = vmatpush2.msra.mxu0 0.0
  %62 = vmatprep.subr.mxu0 0.0
  %63 = vmatpush2.msra.mxu0 0.0
  %64 = vmatprep.subr.mxu0 0.0
  %65 = vmatpush2.msra.mxu0 0.0
  %66 = vmatprep.subr.mxu0 0.0
  %67 = vmatpush2.msra.mxu0 0.0
  %68 = vmatprep.subr.mxu0 0.0
  %69 = vmatpush2.msra.mxu0 0.0
  %70 = vmatprep.subr.mxu0 0.0
  %71 = vmatpush2.msra.mxu0 0.0
  %72 = vmatprep.subr.mxu0 0.0
  %73 = vmatpush2.msra.mxu0 0.0
  %74 = vmatprep.subr.mxu0 0.0
  %75 = vmatpush2.msra.mxu0 0.0
  %76 = vmatprep.subr.mxu0 0.0
  %77 = vmatpush2.msra.mxu0 0.0
  %78 = vmatprep.subr.mxu0 0.0
  %79 = vmatpush2.msra.mxu0 0.0
  %80 = vmatprep.subr.mxu0 0.0
  %81 = vmatpush2.msra.mxu0 0.0
  %82 = vmatprep.subr.mxu0 0.0
  %83 = vmatpush2.msra.mxu0 0.0
  %84 = vmatprep.subr.mxu0 0.0
  %85 = vmatpush2.msra.mxu0 0.0
  %86 = vmatprep.subr.mxu0 0.0
  %87 = vmatpush2.msra.mxu0 0.0
  %88 = vmatprep.subr.mxu0 0.0
  %89 = vmatpush2.msra.mxu0 0.0
  %90 = vmatprep.subr.mxu0 0.0
  %91 = vmatpush2.msra.mxu0 0.0
  %92 = vmatprep.mubr.f32.mxu0 0.0
  %93 = vmatmul.mubr.f32.gmra.mxu0 %v26
  %v94 = vpop.f32.mrf.mxu0
  %v95 = vadd.f32 %v22, %v94
  %v96 = vpop.f32.mrf.mxu0
  %97 = vdwg.mxu0
  %vm98 = vcmask 31744
  %99 = vst.msk [vmem:[%s3] sm:$0xff] %vm98, %v95
  // Predicated region
  $region14: #{linear_regression_forward.1} parent=0 // pred_check
    _
  $region15: #{linear_regression_forward.1} parent=0 // pred_check_branch
    %101 = sbr.rel (0) target = $region17
  $region16: #{linear_regression_forward.1} parent=0 // pred_region
    _
  $region17: #{linear_regression_forward.1} parent=0 // pred_fallthru
    _
  // Predicated region
  $region18: #{linear_regression_forward.1} parent=0 // pred_check
    _
  $region19: #{linear_regression_forward.1} parent=0 // pred_check_branch
    %103 = sbr.rel (0) target = $region21
  $region20: #{linear_regression_forward.1} parent=0 // pred_region
    _
  $region21: #{linear_regression_forward.1} parent=0 // pred_fallthru
    _

</llo_original>
